<compile_context>
chip_gen: v7x
topology: tpu7x:2x2x1
jax: 0.10.0
libtpu: 0.0.40
codegen_flags: <defaults>
</compile_context>

<pallas_src>
import functools
import math
import numpy as np
import jax
import jax.numpy as jnp
from jax import lax
from jax.experimental import pallas as pl
from jax.experimental.pallas import tpu as pltpu


def _round_up(x, m):
    return ((x + m - 1) // m) * m


def _default_vmem_limit_bytes():
    # Generation-dependent scoped-VMEM limit (v5e/v6e: 128 MiB physical, v7x: 64
    # MiB); leave ~25% headroom for Mosaic-internal scratch.
    try:
        cap = getattr(pltpu.get_tpu_info(), "vmem_capacity_bytes", None)
        if cap:
            return int(cap) * 3 // 4
    except Exception:
        pass
    return 48 * 1024 * 1024


_VMEM_LIMIT_BYTES = _default_vmem_limit_bytes()


# ---------------- Pallas kernels (hot path: node-feature preparation) ----------------

def _permute_kernel(x_ref, o_ref):
    # x_ref: (block_b, F, N) slab; o_ref: (block_b, N, F)
    # TODO(synk): fuse this transpose into the consumer GNN matmul (contract over F
    # via dot_general) and/or pad F to a multiple of 128 for lane-dense stores; kept
    # standalone because the module's forward returns the node matrix directly.
    o_ref[...] = jnp.transpose(x_ref[...], (0, 2, 1))


def permute_bfn_to_bnf(x, *, block_b=None, vmem_budget_bytes=None):
    """(B, F, N) -> (B, N, F), many batch elements per grid step."""
    B, F, N = x.shape
    itemsize = jnp.dtype(x.dtype).itemsize
    if vmem_budget_bytes is None:
        # Resident budget: actual residency ~= 2 * (in_block + out_block) because
        # Pallas double-buffers both specs.  ~12 MiB blocks on v7x, ~16 MiB on v5e/v6e.
        vmem_budget_bytes = min(32 << 20, _VMEM_LIMIT_BYTES // 2)
    if block_b is None:
        per_elem = (_round_up(F, 8) * _round_up(N, 128)
                    + _round_up(N, 8) * _round_up(F, 128)) * itemsize
        block_b = int(max(1, min(B, vmem_budget_bytes // max(2 * per_elem, 1))))
    grid = (pl.cdiv(B, block_b),)
    return pl.pallas_call(
        _permute_kernel,
        out_shape=jax.ShapeDtypeStruct((B, N, F), x.dtype),
        grid=grid,
        in_specs=[pl.BlockSpec((block_b, F, N), lambda i: (i, 0, 0))],
        out_specs=pl.BlockSpec((block_b, N, F), lambda i: (i, 0, 0)),
        compiler_params=pltpu.CompilerParams(
            dimension_semantics=("parallel",),
            vmem_limit_bytes=_VMEM_LIMIT_BYTES),
    )(x)


def _window_kernel(*refs, window_size, stride, wt, t_block, n_straddle, unroll):
    # refs: (x_main_ref[, x_tail_ref], o_ref)
    #   x_main_ref: (t_block, N) time chunk covering this group's window starts
    #   x_tail_ref: (t2, N) chunk immediately after the main chunk (only present
    #               when windows straddle the main-chunk boundary)
    #   o_ref:      (wt, N, window_size) output block for this group of windows
    if n_straddle > 0:
        x_main_ref, x_tail_ref, o_ref = refs
    else:
        x_main_ref, o_ref = refs
        x_tail_ref = None
    n_main = wt - n_straddle
    aligned = (stride % 8 == 0)

    if n_main > 0:
        def body(w, carry):
            start = w * stride
            if aligned:
                start = pl.multiple_of(start, 8)
            win = x_main_ref[pl.ds(start, window_size), :]      # (ws, N)
            o_ref[w] = jnp.transpose(win, (1, 0))               # (N, ws)
            return carry
        lax.fori_loop(0, n_main, body, 0, unroll=max(1, min(unroll, n_main)))

    # Straddling windows (static offsets): tail of the main block + head of the
    # tail block.
    for w in range(n_main, wt):
        s = w * stride
        len1 = t_block - s                                       # 0 < len1 < ws
        part1 = x_main_ref[pl.ds(s, len1), :]
        part2 = x_tail_ref[pl.ds(0, window_size - len1), :]
        win = jnp.concatenate([part1, part2], axis=0)
        o_ref[w] = jnp.transpose(win, (1, 0))


def chunk_time_windows(x, window_size, stride, *, windows_per_step=None,
                       vmem_budget_bytes=None, unroll=8):
    """(B, T, N) -> (B, W, N, window_size), W = (T - window_size)//stride + 1.

    The time axis is chunked per group of `wt` windows (main block of wt*stride
    rows + a small aligned tail block for straddling windows), so VMEM usage is
    bounded independently of T.  Trailing samples shorter than a window are
    dropped (torch.unfold semantics)."""
    B, T, N = x.shape
    W = (T - window_size) // stride + 1
    if W <= 0:
        return jnp.zeros((B, 0, N, window_size), dtype=x.dtype)

    itemsize = jnp.dtype(x.dtype).itemsize
    sub = 8 * max(1, 4 // itemsize)          # sublane multiple for this dtype

    if window_size > stride:
        # Tail chunk along T covering the overshoot of straddling windows.
        t2 = _round_up(window_size - stride, sub)
        d = t2 // math.gcd(stride, t2)       # wt multiple of d  =>  t2 | wt*stride
    else:
        t2 = 0
        d = sub // math.gcd(stride, sub)     # keep wt*stride sublane-aligned

    if vmem_budget_bytes is None:
        vmem_budget_bytes = min(24 << 20, _VMEM_LIMIT_BYTES // 3)

    if W < d or d * stride > T:
        # Short-recording fallback: a single group over the full time axis (block
        # dims equal full array dims, so no alignment constraint).  Only reachable
        # when the recording holds just a handful of windows.
        wt, t_block, t2, n_straddle = W, T, 0, 0
        n_groups = 1
    else:
        lane_n = _round_up(N, 128) * itemsize
        per_w = 2 * (stride * lane_n
                     + _round_up(N, sub) * _round_up(window_size, 128) * itemsize)
        fixed = 2 * t2 * lane_n
        wt_budget = max(1, (vmem_budget_bytes - fixed) // max(per_w, 1))
        wt = windows_per_step if windows_per_step is not None else min(wt_budget, 128)
        wt = min(int(wt), W, T // stride)
        wt = max(d, (wt // d) * d)           # multiple of d, at least d
        t_block = wt * stride
        n_groups = pl.cdiv(W, wt)
        n_straddle = sum(1 for w in range(wt)
                         if w * stride + window_size > t_block)

    in_specs = [pl.BlockSpec((None, t_block, N), lambda b, g: (b, g, 0))]
    operands = [x]
    if n_straddle > 0:
        r = t_block // t2                    # exact by construction (t2 | t_block)
        n2 = pl.cdiv(T, t2)
        in_specs.append(
            pl.BlockSpec((None, t2, N),
                         lambda b, g: (b, jnp.minimum((g + 1) * r, n2 - 1), 0)))
        operands.append(x)

    kernel = functools.partial(_window_kernel, window_size=window_size,
                               stride=stride, wt=wt, t_block=t_block,
                               n_straddle=n_straddle, unroll=unroll)
    # TODO(synk): window_size pads the store lane dim to 128 (e.g. 100->128); a
    # 128-multiple window_size or fusing into the consumer GNN matmul would make
    # the stores lane-dense.
    return pl.pallas_call(
        kernel,
        out_shape=jax.ShapeDtypeStruct((B, W, N, window_size), x.dtype),
        grid=(B, n_groups),
        in_specs=in_specs,
        out_specs=pl.BlockSpec((None, wt, N, window_size),
                               lambda b, g: (b, g, 0, 0)),
        compiler_params=pltpu.CompilerParams(
            dimension_semantics=("parallel", "parallel"),
            vmem_limit_bytes=_VMEM_LIMIT_BYTES),
    )(*operands)


# ---------------- module (glue + fixed adjacency built at init) ----------------

class DistanceGraphBuilder:
    def __init__(self, dist_matrix, distance_threshold,
                 use_windows=False, window_size=100, stride=50):
        dist = np.asarray(dist_matrix, dtype=np.float32)
        mask = dist <= distance_threshold
        np.fill_diagonal(mask, False)
        adj = mask.astype(np.float32)
        # torch_geometric.utils.dense_to_sparse semantics on the 0/1 adjacency:
        # row-major nonzeros, edge_index[0]=row, edge_index[1]=col, weights are the
        # adjacency values (all 1.0), matching the PyTorch reference.
        # (init-time, dynamic edge count -> host-side numpy, not a kernel)
        src, dst = np.nonzero(adj)
        self.edge_index = jnp.asarray(np.stack([src, dst], axis=0), dtype=jnp.int32)
        self.edge_weight = jnp.asarray(adj[src, dst], dtype=jnp.float32)
        self.num_nodes = int(dist.shape[0])
        self.use_windows = use_windows
        self.window_size = window_size
        self.stride = stride

    def forward(self, x):
        if self.use_windows:
            wins = chunk_time_windows(x, self.window_size, self.stride)  # (B,W,N,ws)
            B, W, N, F = wins.shape
            x_prepared = wins.reshape(B * W, N, F)
        else:
            x_prepared = permute_bfn_to_bnf(x)                           # (B,N,F)
        G, N, F = x_prepared.shape
        E = self.edge_index.shape[1]

        # Batch.from_data_list bookkeeping (index arithmetic only, not a hot path).
        node_x = x_prepared.reshape(G * N, F)
        offsets = (jnp.arange(G, dtype=jnp.int32) * N)[:, None, None]    # (G,1,1)
        ei = self.edge_index[None, :, :] + offsets                       # (G,2,E)
        edge_index_b = jnp.transpose(ei, (1, 0, 2)).reshape(2, G * E)
        edge_attr_b = jnp.tile(self.edge_weight, (G,))
        batch_vec = jnp.repeat(jnp.arange(G, dtype=jnp.int32), N)
        # TODO(synk): torch_geometric.data.Batch is a Python container; returned as a dict.
        return {"x": node_x, "edge_index": edge_index_b,
                "edge_attr": edge_attr_b, "batch": batch_vec}


# ---------------- demo / correctness check ----------------

if __name__ == "__main__":
    N = 19  # number of channels / graph nodes (as in the docstring)

    # Deterministic "distance CSV": nodes placed on a circle of radius 10.
    ang = 2.0 * np.pi * np.arange(N) / N
    pos = np.stack([10.0 * np.cos(ang), 10.0 * np.sin(ang)], axis=1)
    dist_mat = np.linalg.norm(pos[:, None, :] - pos[None, :, :], axis=-1)

    key = jax.random.PRNGKey(0)
    k1, k2, k3, k4 = jax.random.split(key, 4)

    # ---- default path: use_windows=False, x: (B, F, N) ----
    B, F = 2, 32
    x = jax.random.normal(k1, (B, F, N), dtype=jnp.float32)
    builder = DistanceGraphBuilder(dist_mat, distance_threshold=4.0)
    out = builder.forward(x)
    jax.block_until_ready(out)

    ref_nodes = jnp.transpose(x, (0, 2, 1)).reshape(B * N, F)
    assert jnp.allclose(out["x"], ref_nodes)
    assert out["edge_index"].shape == (2, B * builder.edge_index.shape[1])
    assert out["batch"].shape == (B * N,)

    # ragged B-blocking path (last block partially out of bounds, writes masked)
    x3 = jax.random.normal(k3, (3, F, N), dtype=jnp.float32)
    p3 = permute_bfn_to_bnf(x3, block_b=2)
    jax.block_until_ready(p3)
    assert jnp.allclose(p3, jnp.transpose(x3, (0, 2, 1)))

    # ---- windowed path: use_windows=True, x: (B, T, N) ----
    T, ws, st = 64, 16, 8
    xw = jax.random.normal(k2, (B, T, N), dtype=jnp.float32)
    builder_w = DistanceGraphBuilder(dist_mat, distance_threshold=4.0,
                                     use_windows=True, window_size=ws, stride=st)
    out_w = builder_w.forward(xw)
    jax.block_until_ready(out_w)

    W = (T - ws) // st + 1
    idx = st * np.arange(W)[:, None] + np.arange(ws)[None, :]
    ref_w = jnp.transpose(xw[:, idx, :], (0, 1, 3, 2)).reshape(B * W * N, ws)
    assert jnp.allclose(out_w["x"], ref_w)

    # ragged window-group path (W=7, 4 windows per step -> last group padded /
    # masked; straddling window crosses the main/tail chunk boundary)
    wins_ragged = chunk_time_windows(xw, ws, st, windows_per_step=4)
    jax.block_until_ready(wins_ragged)
    assert jnp.allclose(wins_ragged.reshape(B * W * N, ws), ref_w)

    # stride not dividing 8 (tail alignment factor d > 1) with several straddling
    # windows per group and a ragged last group
    ws2, st2 = 12, 5
    W2 = (T - ws2) // st2 + 1
    wins2 = chunk_time_windows(xw, ws2, st2, windows_per_step=8)
    jax.block_until_ready(wins2)
    idx2 = st2 * np.arange(W2)[:, None] + np.arange(ws2)[None, :]
    ref2 = jnp.transpose(xw[:, idx2, :], (0, 1, 3, 2))
    assert jnp.allclose(wins2, ref2)

    # short-recording fallback path (W < alignment multiple -> full-T block)
    T3, ws3, st3 = 500, 100, 50
    xw3 = jax.random.normal(k4, (B, T3, N), dtype=jnp.float32)
    W3 = (T3 - ws3) // st3 + 1
    wins3 = chunk_time_windows(xw3, ws3, st3)
    jax.block_until_ready(wins3)
    idx3 = st3 * np.arange(W3)[:, None] + np.arange(ws3)[None, :]
    ref3 = jnp.transpose(xw3[:, idx3, :], (0, 1, 3, 2))
    assert jnp.allclose(wins3, ref3)

    print("KERNEL_OK")
</pallas_src>

<mosaic_0001>
module attributes {stable_mosaic.version = 11 : i64} {
  func.func @_permute_kernel(%arg0: i32, %arg1: memref<2x32x19xf32, #tpu.memory_space<vmem>>, %arg2: memref<2x19x32xf32, #tpu.memory_space<vmem>>) attributes {dimension_semantics = [#tpu.dimension_semantics<parallel>], iteration_bounds = array<i64: 1>, scalar_prefetch = 0 : i64, scratch_operands = 0 : i64, tpu.core_type = #tpu.core_type<tc>, window_params = [{transform_indices = @transform_0, window_bounds = array<i64: 2, 32, 19>}, {transform_indices = @transform_1, window_bounds = array<i64: 2, 19, 32>}]} {
    %c0 = arith.constant 0 : index
    %c0_0 = arith.constant 0 : index
    %c0_1 = arith.constant 0 : index
    %0 = vector.load %arg1[%c0, %c0_0, %c0_1] : memref<2x32x19xf32, #tpu.memory_space<vmem>>, vector<2x32x19xf32>
    %1 = tpu.transpose %0, [0, 2, 1] : vector<2x32x19xf32> -> vector<2x19x32xf32>
    %c0_2 = arith.constant 0 : index
    %c0_3 = arith.constant 0 : index
    %c0_4 = arith.constant 0 : index
    %2 = vector.load %arg2[%c0_2, %c0_3, %c0_4] : memref<2x19x32xf32, #tpu.memory_space<vmem>>, vector<2x19x32xf32>
    tpu.vector_store %arg2[%c0_2, %c0_3, %c0_4], %1 {strides = array<i32>} : memref<2x19x32xf32, #tpu.memory_space<vmem>>, vector<2x19x32xf32>,
    return
  }
  func.func @transform_0(%arg0: i32) -> (i32, i32, i32) {
    %c0_i32 = arith.constant 0 : i32
    %c0_i32_0 = arith.constant 0 : i32
    %c0_i32_1 = arith.constant 0 : i32
    return %arg0, %c0_i32, %c0_i32_0 : i32, i32, i32
  }
  func.func @transform_1(%arg0: i32) -> (i32, i32, i32) {
    %c0_i32 = arith.constant 0 : i32
    %c0_i32_0 = arith.constant 0 : i32
    %c0_i32_1 = arith.constant 0 : i32
    return %arg0, %c0_i32, %c0_i32_0 : i32, i32, i32
  }
}

</mosaic_0001>

<llo_original>
// kernel: tpu_custom_call.1
$region0: #{tpu_custom_call.1}
  #allocation0 [shape = 'u32[]', space=smem, size = 0x4, offset = 0x4, fixed_abs, tag = 'smem constant byte address 0x4 - core index']
  #allocation1 [shape = 'u32[144,128]{1,0:T(1,128)}', space=vmem, size = 0x12000, scoped, tag = 'internal scratch']
  %s0 = inlined_call_operand.vmem [shape: f32[2,32,19], index: 0, kind: input, shape index: {}]
  %s1 = inlined_call_operand.vmem [shape: f32[2,19,32], index: 1, kind: output, shape index: {}]
  %s2 = sld [smem:[#allocation0]]
  $region14: #{tpu_custom_call.1} parent=0
    _
  %s4 = ssub.s32 1, %s2
  %s5 = scalar_select 0, %s4, %s2
  // Predicated region
  $region2: #{tpu_custom_call.1} parent=0 // pred_check
    _
  $region3: #{tpu_custom_call.1} parent=0 // pred_check_branch
    %7 = sbr.rel (0) target = $region5
  $region4: #{tpu_custom_call.1} parent=0 // pred_region
    _
  $region5: #{tpu_custom_call.1} parent=0 // pred_fallthru
    _
  %v8 = vld [vmem:[%s0] sm:$0xff]
  %v9 = vld [vmem:[%s0 + $0x8] sm:$0xff]
  %v10 = vld [vmem:[%s0 + $0x10] sm:$0xff]
  %v11 = vld [vmem:[%s0 + $0x18] sm:$0xff]
  %v12 = vld [vmem:[%s0 + $0x20] sm:$0xff]
  %v13 = vld [vmem:[%s0 + $0x28] sm:$0xff]
  %v14 = vld [vmem:[%s0 + $0x30] sm:$0xff]
  %v15 = vld [vmem:[%s0 + $0x38] sm:$0xff]
  %16 = vxpose.xlu0.b32.start [1/16] %v8, 128
  %17 = vxpose.xlu0.b32.cont [2/16] %v9, 128
  %18 = vxpose.xlu0.b32.cont [3/16] %v10, 128
  %19 = vxpose.xlu0.b32.cont [4/16] %v11, 128
  %20 = vxpose.xlu0.b32.cont [5/16] 0.0, 128
  %21 = vxpose.xlu0.b32.cont [6/16] 0.0, 128
  %22 = vxpose.xlu0.b32.cont [7/16] 0.0, 128
  %23 = vxpose.xlu0.b32.cont [8/16] 0.0, 128
  %24 = vxpose.xlu0.b32.cont [9/16] 0.0, 128
  %25 = vxpose.xlu0.b32.cont [10/16] 0.0, 128
  %26 = vxpose.xlu0.b32.cont [11/16] 0.0, 128
  %27 = vxpose.xlu0.b32.cont [12/16] 0.0, 128
  %28 = vxpose.xlu0.b32.cont [13/16] 0.0, 128
  %29 = vxpose.xlu0.b32.cont [14/16] 0.0, 128
  %30 = vxpose.xlu0.b32.cont [15/16] 0.0, 128
  %31 = vxpose.xlu0.b32.end [16/16] 0.0, 128
  %v32 = vpop.trf.xlu0
  %v33 = vpop.trf.xlu0
  %v34 = vpop.trf.xlu0
  %v35 = vpop.trf.xlu0
  %v36 = vpop.trf.xlu0
  %v37 = vpop.trf.xlu0
  %v38 = vpop.trf.xlu0
  %v39 = vpop.trf.xlu0
  %v40 = vpop.trf.xlu0
  %v41 = vpop.trf.xlu0
  %v42 = vpop.trf.xlu0
  %v43 = vpop.trf.xlu0
  %v44 = vpop.trf.xlu0
  %v45 = vpop.trf.xlu0
  %v46 = vpop.trf.xlu0
  %v47 = vpop.trf.xlu0
  %48 = vxpose.xlu0.b32.start [1/16] %v12, 128
  %49 = vxpose.xlu0.b32.cont [2/16] %v13, 128
  %50 = vxpose.xlu0.b32.cont [3/16] %v14, 128
  %51 = vxpose.xlu0.b32.cont [4/16] %v15, 128
  %52 = vxpose.xlu0.b32.cont [5/16] 0.0, 128
  %53 = vxpose.xlu0.b32.cont [6/16] 0.0, 128
  %54 = vxpose.xlu0.b32.cont [7/16] 0.0, 128
  %55 = vxpose.xlu0.b32.cont [8/16] 0.0, 128
  %56 = vxpose.xlu0.b32.cont [9/16] 0.0, 128
  %57 = vxpose.xlu0.b32.cont [10/16] 0.0, 128
  %58 = vxpose.xlu0.b32.cont [11/16] 0.0, 128
  %59 = vxpose.xlu0.b32.cont [12/16] 0.0, 128
  %60 = vxpose.xlu0.b32.cont [13/16] 0.0, 128
  %61 = vxpose.xlu0.b32.cont [14/16] 0.0, 128
  %62 = vxpose.xlu0.b32.cont [15/16] 0.0, 128
  %63 = vxpose.xlu0.b32.end [16/16] 0.0, 128
  %v64 = vpop.trf.xlu0
  %v65 = vpop.trf.xlu0
  %v66 = vpop.trf.xlu0
  %v67 = vpop.trf.xlu0
  %v68 = vpop.trf.xlu0
  %v69 = vpop.trf.xlu0
  %v70 = vpop.trf.xlu0
  %v71 = vpop.trf.xlu0
  %v72 = vpop.trf.xlu0
  %v73 = vpop.trf.xlu0
  %v74 = vpop.trf.xlu0
  %v75 = vpop.trf.xlu0
  %v76 = vpop.trf.xlu0
  %v77 = vpop.trf.xlu0
  %v78 = vpop.trf.xlu0
  %v79 = vpop.trf.xlu0
  %vm80 = vcmask 261120
  %81 = vst.msk [vmem:[%s1] sm:$0xff] %vm80, %v32
  %82 = vst.msk [vmem:[%s1 + $0x8] sm:$0xff] %vm80, %v33
  %vm83 = vcmask 256000
  %84 = vst.msk [vmem:[%s1 + $0x10] sm:$0x7] %vm83, %v34
  %85 = vst.msk [vmem:[%s1 + $0x18] sm:$0xff] %vm80, %v64
  %86 = vst.msk [vmem:[%s1 + $0x20] sm:$0xff] %vm80, %v65
  %87 = vst.msk [vmem:[%s1 + $0x28] sm:$0x7] %vm83, %v66
  // Predicated region
  $region6: #{tpu_custom_call.1} parent=0 // pred_check
    _
  $region7: #{tpu_custom_call.1} parent=0 // pred_check_branch
    %89 = sbr.rel (0) target = $region9
  $region8: #{tpu_custom_call.1} parent=0 // pred_region
    _
  $region9: #{tpu_custom_call.1} parent=0 // pred_fallthru
    _
  // Predicated region
  $region10: #{tpu_custom_call.1} parent=0 // pred_check
    _
  $region11: #{tpu_custom_call.1} parent=0 // pred_check_branch
    %91 = sbr.rel (0) target = $region13
  $region12: #{tpu_custom_call.1} parent=0 // pred_region
    _
  $region13: #{tpu_custom_call.1} parent=0 // pred_fallthru
    _

</llo_original>
